<compile_context>
chip_gen: v5e
topology: v5e:2x2
jax: 0.10.0
libtpu: 0.0.40
codegen_flags: <defaults>
</compile_context>

<pallas_src>
import math

import jax
import jax.numpy as jnp
from jax.experimental import pallas as pl
from jax.experimental.pallas import tpu as pltpu


def _prior_logprob_kernel(x_ref, low_ref, high_ref, o_ref):
    # x_ref:            (tr, L) tile, L = k*D lanes (multiple of 128 -> unmasked vst)
    # low_ref/high_ref: (1, L), resident across the whole grid
    x = x_ref[...]
    low = low_ref[...]
    high = high_ref[...]
    # Normalizer on the tiny (1, L) operand: L EUP logs per grid step
    # (separate bundle slot), broadcast along sublanes by the select below.
    norm = -jnp.log(high - low)                    # (1, L)
    in_support = (low <= x) & (x < high)           # (tr, L), pure VPU
    # torch.Uniform.log_prob(validate_args=False): log(0) = -inf outside support.
    o_ref[...] = jnp.where(in_support, norm, -jnp.inf)


def prior_log_prob(x, low, high, *, max_row_tile=512):
    """Uniform(low, high).log_prob(x), torch semantics (validate_args=False).

    x: (B, D) float; low, high: (D,) float  ->  (B, D) float.
    """
    B, D = x.shape
    dtype = x.dtype

    # Lane-dense packing: fold k batch rows into one lane row of width L = k*D,
    # the smallest multiple of 128.  Reshape is a free row-major view.
    k = 128 // math.gcd(D, 128)
    L = k * D

    rows = pl.cdiv(B, k)                               # rows of width L needed
    tr = min(max_row_tile, pl.cdiv(rows, 8) * 8)       # sublane tile (mult. of 8)
    rows_pad = pl.cdiv(rows, tr) * tr
    B_pad = rows_pad * k

    if B_pad != B:
        x = jnp.pad(x, ((0, B_pad - B), (0, 0)))       # padded rows sliced away
    x2 = x.reshape(rows_pad, L)

    low_row = jnp.tile(low.astype(dtype), k).reshape(1, L)
    high_row = jnp.tile(high.astype(dtype), k).reshape(1, L)

    out2 = pl.pallas_call(
        _prior_logprob_kernel,
        out_shape=jax.ShapeDtypeStruct((rows_pad, L), dtype),
        grid=(rows_pad // tr,),
        in_specs=[
            pl.BlockSpec((tr, L), lambda i: (i, 0)),   # x tile (lane-dense)
            pl.BlockSpec((1, L), lambda i: (0, 0)),    # low (resident)
            pl.BlockSpec((1, L), lambda i: (0, 0)),    # high (resident)
        ],
        out_specs=pl.BlockSpec((tr, L), lambda i: (i, 0)),
        compiler_params=pltpu.CompilerParams(
            dimension_semantics=("parallel",),         # megacore sharding on v7x
        ),
    )(x2, low_row, high_row)

    out = out2.reshape(B_pad, D)
    return out if B_pad == B else out[:B]


def _reference_log_prob(x, low, high):
    # Mirrors torch.distributions.Uniform.log_prob (validate_args=False).
    lb = (low[None, :] <= x).astype(x.dtype)
    ub = (x < high[None, :]).astype(x.dtype)
    return jnp.log(lb * ub) - jnp.log(high - low)[None, :]


def _check(out, ref):
    finite = jnp.isfinite(ref)
    assert bool(jnp.all(jnp.isfinite(out) == finite))
    assert bool(jnp.allclose(jnp.where(finite, out, 0.0),
                             jnp.where(finite, ref, 0.0),
                             atol=1e-6, rtol=1e-6))


if __name__ == "__main__":
    # SLCP prior: Uniform(-3, 3) over 5 dims (deterministic parameter init).
    D = 5
    low = jnp.full((D,), -3.0, dtype=jnp.float32)
    high = jnp.full((D,), 3.0, dtype=jnp.float32)

    key = jax.random.PRNGKey(0)

    # Small demo batch (some samples deliberately out of support).
    B = 16
    x = jax.random.uniform(key, (B, D), dtype=jnp.float32, minval=-4.0, maxval=4.0)
    out = jax.block_until_ready(prior_log_prob(x, low, high))
    _check(out, _reference_log_prob(x, low, high))

    # Non-multiple batch size to exercise the cdiv + padding path.
    B2 = 300
    x2 = jax.random.uniform(jax.random.PRNGKey(0), (B2, D), dtype=jnp.float32,
                            minval=-4.0, maxval=4.0)
    out2 = jax.block_until_ready(prior_log_prob(x2, low, high))
    _check(out2, _reference_log_prob(x2, low, high))

    # TODO(synk): Prior.sample() (RNG draw) is not part of forward(); not implemented here.
    print("KERNEL_OK")
</pallas_src>

<mosaic_0001>
module attributes {stable_mosaic.version = 11 : i64} {
  func.func @_prior_logprob_kernel(%arg0: i32, %arg1: memref<8x640xf32, #tpu.memory_space<vmem>>, %arg2: memref<1x640xf32, #tpu.memory_space<vmem>>, %arg3: memref<1x640xf32, #tpu.memory_space<vmem>>, %arg4: memref<8x640xf32, #tpu.memory_space<vmem>>) attributes {dimension_semantics = [#tpu.dimension_semantics<parallel>], iteration_bounds = array<i64: 1>, scalar_prefetch = 0 : i64, scratch_operands = 0 : i64, tpu.core_type = #tpu.core_type<tc>, window_params = [{transform_indices = @transform_0, window_bounds = array<i64: 8, 640>}, {pipeline_mode = #tpu.pipeline_mode<synchronous>, transform_indices = @transform_1, window_bounds = array<i64: 1, 640>}, {pipeline_mode = #tpu.pipeline_mode<synchronous>, transform_indices = @transform_2, window_bounds = array<i64: 1, 640>}, {transform_indices = @transform_3, window_bounds = array<i64: 8, 640>}]} {
    %c0 = arith.constant 0 : index
    %c0_0 = arith.constant 0 : index
    %0 = vector.load %arg1[%c0, %c0_0] : memref<8x640xf32, #tpu.memory_space<vmem>>, vector<8x640xf32>
    %c0_1 = arith.constant 0 : index
    %c0_2 = arith.constant 0 : index
    %1 = vector.load %arg2[%c0_1, %c0_2] : memref<1x640xf32, #tpu.memory_space<vmem>>, vector<1x640xf32>
    %c0_3 = arith.constant 0 : index
    %c0_4 = arith.constant 0 : index
    %2 = vector.load %arg3[%c0_3, %c0_4] : memref<1x640xf32, #tpu.memory_space<vmem>>, vector<1x640xf32>
    %3 = arith.subf %2, %1 : vector<1x640xf32>
    %4 = math.log %3 : vector<1x640xf32>
    %cst = arith.constant 0.000000e+00 : f32
    %5 = vector.broadcast %cst : f32 to vector<1x640xf32>
    %6 = arith.subf %5, %4 : vector<1x640xf32>
    %7 = vector.broadcast %1 : vector<1x640xf32> to vector<8x640xf32>
    %8 = arith.cmpf ole, %7, %0 : vector<8x640xf32>
    %9 = vector.broadcast %2 : vector<1x640xf32> to vector<8x640xf32>
    %10 = arith.cmpf olt, %0, %9 : vector<8x640xf32>
    %11 = arith.andi %8, %10 : vector<8x640xi1>
    %cst_5 = arith.constant 0xFF800000 : f32
    %12 = vector.shape_cast %6 : vector<1x640xf32> to vector<1x640xf32>
    %13 = vector.broadcast %12 : vector<1x640xf32> to vector<8x640xf32>
    %14 = vector.broadcast %cst_5 : f32 to vector<8x640xf32>
    %15 = arith.select %11, %13, %14 : vector<8x640xi1>, vector<8x640xf32>
    %c0_6 = arith.constant 0 : index
    %c0_7 = arith.constant 0 : index
    %16 = vector.load %arg4[%c0_6, %c0_7] : memref<8x640xf32, #tpu.memory_space<vmem>>, vector<8x640xf32>
    tpu.vector_store %arg4[%c0_6, %c0_7], %15 {strides = array<i32>} : memref<8x640xf32, #tpu.memory_space<vmem>>, vector<8x640xf32>,
    return
  }
  func.func @transform_0(%arg0: i32) -> (i32, i32) {
    %c0_i32 = arith.constant 0 : i32
    %c0_i32_0 = arith.constant 0 : i32
    return %arg0, %c0_i32 : i32, i32
  }
  func.func @transform_1(%arg0: i32) -> (i32, i32) {
    %c0_i32 = arith.constant 0 : i32
    %c0_i32_0 = arith.constant 0 : i32
    %c0_i32_1 = arith.constant 0 : i32
    return %c0_i32, %c0_i32_0 : i32, i32
  }
  func.func @transform_2(%arg0: i32) -> (i32, i32) {
    %c0_i32 = arith.constant 0 : i32
    %c0_i32_0 = arith.constant 0 : i32
    %c0_i32_1 = arith.constant 0 : i32
    return %c0_i32, %c0_i32_0 : i32, i32
  }
  func.func @transform_3(%arg0: i32) -> (i32, i32) {
    %c0_i32 = arith.constant 0 : i32
    %c0_i32_0 = arith.constant 0 : i32
    return %arg0, %c0_i32 : i32, i32
  }
}

</mosaic_0001>

<llo_original>
// kernel: tpu_custom_call.1
$region0: #{tpu_custom_call.1}
  #allocation0 [shape = 'u32[]', space=smem, size = 0x4, offset = 0x4, fixed_abs, tag = 'smem constant byte address 0x4 - core index']
  #allocation1 [shape = 'u32[72,128]{1,0:T(1,128)}', space=vmem, size = 0x9000, scoped, tag = 'internal scratch']
  %s0 = inlined_call_operand.hbm [shape: f32[8,640], index: 0, kind: input, shape index: {}]
  %s1 = inlined_call_operand.hbm [shape: f32[1,640], index: 1, kind: input, shape index: {}]
  %s2 = inlined_call_operand.hbm [shape: f32[1,640], index: 2, kind: input, shape index: {}]
  %s3 = inlined_call_operand.hbm [shape: f32[8,640], index: 3, kind: output, shape index: {}]
  %s4 = sld [smem:[#allocation0]]
  $region34: #{tpu_custom_call.1} parent=0
    _
  %s6 = ssub.s32 1, %s4
  %s7 = scalar_select 0, %s6, %s4
  $region1: #{tpu_custom_call.1} parent=0
    #allocation2 [shape = 'u8[20480]{0}', space=vmem, size = 0x5000, scoped, tag = 'input window, operand 0, single buffered']
    #allocation3 [shape = 's32[1]{0}', space=sflag, size = 0x4, scoped, tag = 'scoped memory for tpu_custom_call.1']
    #allocation4 [shape = 's32[1]{0}', space=sflag, size = 0x4, scoped, tag = 'scoped memory for tpu_custom_call.1']
    #allocation5 [shape = 'u8[2560]{0}', space=vmem, size = 0xc00, scoped, tag = 'input window, operand 1, single buffered']
    #allocation6 [shape = 's32[1]{0}', space=sflag, size = 0x4, scoped, tag = 'scoped memory for tpu_custom_call.1']
    #allocation7 [shape = 'u8[2560]{0}', space=vmem, size = 0xc00, scoped, tag = 'input window, operand 2, single buffered']
    #allocation8 [shape = 'u8[20480]{0}', space=vmem, size = 0x5000, scoped, tag = 'output window, operand 0, single buffered']
    %8 = vsyncpa [#allocation3], 0
    %9 = vsyncpa [#allocation6], 0
    %10 = vsyncpa [#allocation4], 0
    // Predicated region
    $region2: #{tpu_custom_call.1} parent=1 // pred_check
      _
    $region3: #{tpu_custom_call.1} parent=1 // pred_check_branch
      %12 = sbr.rel (0) target = $region5
    $region4: #{tpu_custom_call.1} parent=1 // pred_region
      %14 = vsyncadd [#allocation3], 0
      %s16 = sshll.u32 %s0, 4
      %s17 = int_to_ptr.hbm [resolvable:$true] %s16
      %s18 = sshll.u32 [#allocation2], 4
      %s19 = int_to_ptr.vmem [resolvable:$true] %s18
      %21 = dma.hbm_to_vmem [thread:$0]  %s17, 640, %s19, [#allocation3]
    $region5: #{tpu_custom_call.1} parent=1 // pred_fallthru
      _
    // Predicated region
    $region6: #{tpu_custom_call.1} parent=1 // pred_check
      _
    $region7: #{tpu_custom_call.1} parent=1 // pred_check_branch
      %23 = sbr.rel (0) target = $region9
    $region8: #{tpu_custom_call.1} parent=1 // pred_region
      %25 = vsyncadd [#allocation6], 0
      %s27 = sshll.u32 %s1, 4
      %s28 = int_to_ptr.hbm [resolvable:$true] %s27
      %s29 = sshll.u32 [#allocation5], 4
      %s30 = int_to_ptr.vmem [resolvable:$true] %s29
      %32 = dma.hbm_to_vmem [thread:$0]  %s28, 80, %s30, [#allocation6]
    $region9: #{tpu_custom_call.1} parent=1 // pred_fallthru
      _
    // Predicated region
    $region10: #{tpu_custom_call.1} parent=1 // pred_check
      _
    $region11: #{tpu_custom_call.1} parent=1 // pred_check_branch
      %34 = sbr.rel (0) target = $region13
    $region12: #{tpu_custom_call.1} parent=1 // pred_region
      %36 = vsyncadd [#allocation6], 0
      %s38 = sshll.u32 %s2, 4
      %s39 = int_to_ptr.hbm [resolvable:$true] %s38
      %s40 = sshll.u32 [#allocation7], 4
      %s41 = int_to_ptr.vmem [resolvable:$true] %s40
      %43 = dma.hbm_to_vmem [thread:$0]  %s39, 80, %s41, [#allocation6]
    $region13: #{tpu_custom_call.1} parent=1 // pred_fallthru
      _
    // Predicated region
    $region14: #{tpu_custom_call.1} parent=1 // pred_check
      _
    $region15: #{tpu_custom_call.1} parent=1 // pred_check_branch
      %45 = sbr.rel (0) target = $region17
    $region16: #{tpu_custom_call.1} parent=1 // pred_region
      %47 = dma.done [#allocation3], 640
    $region17: #{tpu_custom_call.1} parent=1 // pred_fallthru
      _
    // Predicated region
    $region18: #{tpu_custom_call.1} parent=1 // pred_check
      _
    $region19: #{tpu_custom_call.1} parent=1 // pred_check_branch
      %49 = sbr.rel (0) target = $region21
    $region20: #{tpu_custom_call.1} parent=1 // pred_region
      %51 = dma.done [#allocation6], 80
    $region21: #{tpu_custom_call.1} parent=1 // pred_fallthru
      _
    // Predicated region
    $region22: #{tpu_custom_call.1} parent=1 // pred_check
      _
    $region23: #{tpu_custom_call.1} parent=1 // pred_check_branch
      %53 = sbr.rel (0) target = $region25
    $region24: #{tpu_custom_call.1} parent=1 // pred_region
      %55 = dma.done [#allocation6], 80
    $region25: #{tpu_custom_call.1} parent=1 // pred_fallthru
      _
    %v56 = vld [vmem:[#allocation2] sm:$0xff]
    %v57 = vld [vmem:[#allocation2 + $0x8] sm:$0xff]
    %v58 = vld [vmem:[#allocation2 + $0x10] sm:$0xff]
    %v59 = vld [vmem:[#allocation2 + $0x18] sm:$0xff]
    %v60 = vld [vmem:[#allocation2 + $0x20] sm:$0xff]
    %v61 = vld [vmem:[#allocation5] sm:$0x1f]
    %v62 = vld [vmem:[#allocation7] sm:$0x1f]
    %v63 = vsub.f32 %v62, %v61
    %v64 = vlog2.pop %v63
    %v65 = vmul.f32 %v64, 0.6931472
    %v66 = vsub.f32 0.0, %v65
    %v68 = vperm.slane %v61, 0
    %v69 = vperm.slane %v61, 1
    %v70 = vperm.slane %v61, 2
    %v71 = vperm.slane %v61, 3
    %v72 = vperm.slane %v61, 4
    %vm78 = vcmp.le.f32.partialorder %v68, %v56
    %vm79 = vcmp.le.f32.partialorder %v69, %v57
    %vm80 = vcmp.le.f32.partialorder %v70, %v58
    %vm81 = vcmp.le.f32.partialorder %v71, %v59
    %vm82 = vcmp.le.f32.partialorder %v72, %v60
    %v84 = vperm.slane %v62, 0
    %v85 = vperm.slane %v62, 1
    %v86 = vperm.slane %v62, 2
    %v87 = vperm.slane %v62, 3
    %v88 = vperm.slane %v62, 4
    %vm94 = vcmp.lt.f32.partialorder %v56, %v84
    %vm95 = vcmp.lt.f32.partialorder %v57, %v85
    %vm96 = vcmp.lt.f32.partialorder %v58, %v86
    %vm97 = vcmp.lt.f32.partialorder %v59, %v87
    %vm98 = vcmp.lt.f32.partialorder %v60, %v88
    %vm99 = vmand %vm78, %vm94
    %vm100 = vmand %vm79, %vm95
    %vm101 = vmand %vm80, %vm96
    %vm102 = vmand %vm81, %vm97
    %vm103 = vmand %vm82, %vm98
    %v105 = vperm.slane %v66, 0
    %v106 = vperm.slane %v66, 1
    %v107 = vperm.slane %v66, 2
    %v108 = vperm.slane %v66, 3
    %v109 = vperm.slane %v66, 4
    %v115 = vsel %vm99, %v105, -inf
    %v116 = vsel %vm100, %v106, -inf
    %v117 = vsel %vm101, %v107, -inf
    %v118 = vsel %vm102, %v108, -inf
    %v119 = vsel %vm103, %v109, -inf
    %120 = vst [vmem:[#allocation8] sm:$0xff] %v115
    %121 = vst [vmem:[#allocation8 + $0x8] sm:$0xff] %v116
    %122 = vst [vmem:[#allocation8 + $0x10] sm:$0xff] %v117
    %123 = vst [vmem:[#allocation8 + $0x18] sm:$0xff] %v118
    %124 = vst [vmem:[#allocation8 + $0x20] sm:$0xff] %v119
    // Predicated region
    $region26: #{tpu_custom_call.1} parent=1 // pred_check
      _
    $region27: #{tpu_custom_call.1} parent=1 // pred_check_branch
      %126 = sbr.rel (0) target = $region29
    $region28: #{tpu_custom_call.1} parent=1 // pred_region
      %128 = vsyncadd [#allocation4], 0
      %s130 = sshll.u32 [#allocation8], 4
      %s131 = int_to_ptr.vmem [resolvable:$true] %s130
      %s132 = sshll.u32 %s3, 4
      %s133 = int_to_ptr.hbm [resolvable:$true] %s132
      %135 = dma.vmem_to_hbm [thread:$0]  %s131, 640, %s133, [#allocation4]
    $region29: #{tpu_custom_call.1} parent=1 // pred_fallthru
      _
    // Predicated region
    $region30: #{tpu_custom_call.1} parent=1 // pred_check
      _
    $region31: #{tpu_custom_call.1} parent=1 // pred_check_branch
      %137 = sbr.rel (0) target = $region33
    $region32: #{tpu_custom_call.1} parent=1 // pred_region
      %139 = dma.done [#allocation4], 640
    $region33: #{tpu_custom_call.1} parent=1 // pred_fallthru
      _
    %140 = vsyncpa [#allocation3], 1
    %141 = vsyncpa [#allocation6], 1
    %142 = vsyncpa [#allocation4], 1

</llo_original>
